<compile_context>
chip_gen: v7x
topology: tpu7x:2x2x1
jax: 0.10.0
libtpu: 0.0.40
codegen_flags: <defaults>
</compile_context>

<pallas_src>
import jax
import jax.numpy as jnp
from jax.experimental import pallas as pl
from jax.experimental.pallas import tpu as pltpu


def _sae_kernel_full(x_ref, w_ref, wt_ref, b_ref, feat_ref, recon_ref):
    # Single-shot path (tile_h == H): no reduction axis, no accumulator.
    # x_ref:     (tile_b, D)   input tile
    # w_ref:     (D, H)        encoder weight (block index constant -> one DMA)
    # wt_ref:    (H, D)        decoder weight (= W.T), canonical MXU layout
    # b_ref:     (1, H)        encoder bias
    # feat_ref:  (tile_b, H)   features out
    # recon_ref: (tile_b, D)   reconstruction out
    pre = jnp.dot(x_ref[...], w_ref[...], preferred_element_type=jnp.float32)
    pre = pre + b_ref[...].astype(jnp.float32)
    feat = jnp.maximum(pre, 0.0)
    feat_ref[...] = feat.astype(feat_ref.dtype)
    recon = jnp.dot(feat.astype(wt_ref.dtype), wt_ref[...],
                    preferred_element_type=jnp.float32)
    recon_ref[...] = recon.astype(recon_ref.dtype)


def _sae_kernel_tiled(x_ref, w_ref, wt_ref, b_ref, feat_ref, recon_ref, acc_ref):
    # Tiled path (tile_h < H): grid = (batch tiles, H tiles), H is "arbitrary".
    # acc_ref: (tile_b, D) f32 persistent reconstruction accumulator.
    h = pl.program_id(1)

    pre = jnp.dot(x_ref[...], w_ref[...], preferred_element_type=jnp.float32)
    pre = pre + b_ref[...].astype(jnp.float32)
    feat = jnp.maximum(pre, 0.0)
    feat_ref[...] = feat.astype(feat_ref.dtype)

    contrib = jnp.dot(feat.astype(wt_ref.dtype), wt_ref[...],
                      preferred_element_type=jnp.float32)

    @pl.when(h == 0)
    def _write_through():      # no zero pass / no first read-modify-write
        acc_ref[...] = contrib

    @pl.when(h > 0)
    def _accumulate():
        acc_ref[...] += contrib

    @pl.when(h == pl.num_programs(1) - 1)
    def _finalize():
        recon_ref[...] = acc_ref[...].astype(recon_ref.dtype)


def _default_vmem_budget():
    # ~5/8 of per-core VMEM: ~40 MiB on v7x (64 MiB/TC), ~80 MiB on v5e/v6e
    # (128 MiB).  Leaves headroom for compiler-internal scratch.
    try:
        cap = int(pltpu.get_tpu_info().vmem_capacity_bytes)
    except Exception:
        cap = 64 * 1024 * 1024        # most restrictive generation (v7x)
    return cap * 5 // 8


def _pick_tile_b(B):
    # Large enough to feed the 256-row MXU and raise weight-side arithmetic
    # intensity, while keeping >= 2 batch grid steps so the "parallel" axis
    # can shard across the two TensorCores on v7x.
    for tb in (512, 256, 128, 64, 32, 16, 8):
        if tb <= B and B % tb == 0 and B // tb >= 2:
            return tb
    return B


def _vmem_estimate(tile_b, D, H, tile_h, itemsize):
    # Pipeline blocks are double-buffered; f32 accumulator scratch only exists
    # when the H reduction axis does.
    blocks = 2 * itemsize * (tile_b * D          # x tile
                             + D * tile_h        # W block
                             + tile_h * D        # W.T block
                             + tile_h            # bias block
                             + tile_b * tile_h   # features out
                             + tile_b * D)       # reconstruction out
    if tile_h < H:
        blocks += 4 * tile_b * D
    return blocks


def _pick_tile_h(tile_b, D, H, itemsize, budget):
    # Largest H tile that fits the VMEM budget; tile_h == H drops the
    # reduction axis entirely (weights then DMA'd once for the whole grid).
    if H % 128 != 0 or _vmem_estimate(tile_b, D, H, H, itemsize) <= budget:
        return H
    th = H - 128
    while th > 128:
        if H % th == 0 and _vmem_estimate(tile_b, D, H, th, itemsize) <= budget:
            return th
        th -= 128
    return 128


def sae_forward(x, w_dec, b_enc, *, tile_b=None, tile_h=None,
                compute_dtype=None, vmem_limit_bytes=None):
    """SparseAutoencoder forward.

    x: (B, D); w_dec: (D, H) (== torch decoder.weight); b_enc: (H,).
    Returns (features (B, H), reconstruction (B, D)) in the compute dtype.
    """
    B, D = x.shape
    D2, H = w_dec.shape
    assert D == D2, "weight/input dim mismatch"
    assert b_enc.shape == (H,), "bias/hidden dim mismatch"

    cdtype = jnp.dtype(compute_dtype) if compute_dtype is not None else x.dtype
    itemsize = cdtype.itemsize
    budget = (int(vmem_limit_bytes) if vmem_limit_bytes is not None
              else _default_vmem_budget())

    if tile_b is None:
        tile_b = _pick_tile_b(B)
    tile_b = min(tile_b, B)
    if tile_h is None:
        tile_h = _pick_tile_h(tile_b, D, H, itemsize, budget)
    tile_h = min(tile_h, H)

    assert B % tile_b == 0, f"tile_b={tile_b} must divide batch B={B}"
    assert H % tile_h == 0, f"tile_h={tile_h} must divide hidden H={H}"
    if tile_b != B:
        assert tile_b % 8 == 0, "batch tile must be a multiple of 8 sublanes"
    if tile_h != H:
        assert tile_h % 128 == 0, "hidden tile must be a multiple of 128 lanes"

    xc = x.astype(cdtype)
    wc = w_dec.astype(cdtype)           # (D, H) encoder weight
    wtc = jnp.transpose(wc)             # (H, D) decoder weight, canonical layout
    bc = b_enc.reshape(1, H).astype(cdtype)

    if tile_h == H:
        grid = (B // tile_b,)
        kernel = _sae_kernel_full
        in_specs = [
            pl.BlockSpec((tile_b, D), lambda i: (i, 0)),
            pl.BlockSpec((D, H), lambda i: (0, 0)),
            pl.BlockSpec((H, D), lambda i: (0, 0)),
            pl.BlockSpec((1, H), lambda i: (0, 0)),
        ]
        out_specs = [
            pl.BlockSpec((tile_b, H), lambda i: (i, 0)),
            pl.BlockSpec((tile_b, D), lambda i: (i, 0)),
        ]
        scratch_shapes = []
        dim_sem = ("parallel",)
        w_reads = 1
    else:
        grid = (B // tile_b, H // tile_h)
        kernel = _sae_kernel_tiled
        in_specs = [
            pl.BlockSpec((tile_b, D), lambda i, h: (i, 0)),
            pl.BlockSpec((D, tile_h), lambda i, h: (0, h)),
            pl.BlockSpec((tile_h, D), lambda i, h: (h, 0)),
            pl.BlockSpec((1, tile_h), lambda i, h: (0, h)),
        ]
        out_specs = [
            pl.BlockSpec((tile_b, tile_h), lambda i, h: (i, h)),
            pl.BlockSpec((tile_b, D), lambda i, h: (i, 0)),
        ]
        scratch_shapes = [pltpu.VMEM((tile_b, D), jnp.float32)]
        dim_sem = ("parallel", "arbitrary")
        w_reads = B // tile_b           # W re-streamed per batch tile

    cost = pl.CostEstimate(
        flops=4 * B * D * H,                                    # two GEMMs
        transcendentals=0,
        bytes_accessed=int(itemsize * (B * D                    # x
                                       + w_reads * 2 * D * H    # W and W.T
                                       + H                      # bias
                                       + B * H                  # features out
                                       + B * D)))               # recon out

    feat, recon = pl.pallas_call(
        kernel,
        out_shape=(
            jax.ShapeDtypeStruct((B, H), cdtype),
            jax.ShapeDtypeStruct((B, D), cdtype),
        ),
        grid_spec=pltpu.PrefetchScalarGridSpec(
            num_scalar_prefetch=0,
            grid=grid,
            in_specs=in_specs,
            out_specs=out_specs,
            scratch_shapes=scratch_shapes,
        ),
        compiler_params=pltpu.CompilerParams(
            dimension_semantics=dim_sem,
            vmem_limit_bytes=int(budget),
        ),
        cost_estimate=cost,
    )(xc, wc, wtc, bc)
    return feat, recon


if __name__ == "__main__":
    # TODO(synk): the module's check_tensor NaN/Inf host-side printing has no
    # clean in-kernel equivalent and is omitted (pure forward math only).
    key = jax.random.PRNGKey(0)
    B, D, H = 256, 128, 256   # batch, input_dim, hidden_dim

    kx, kw = jax.random.split(key)
    x = jax.random.normal(kx, (B, D), dtype=jnp.float32)

    # Deterministic init matching the module: decoder.weight ~ N(0, std=1e-4)
    # stored as (D, H), encoder.weight = decoder.weight.T, encoder.bias = 0.
    w_dec = jax.random.normal(kw, (D, H), dtype=jnp.float32) * 1e-4
    b_enc = jnp.zeros((H,), dtype=jnp.float32)

    # Pure-JAX reference.
    feat_ref = jnp.maximum(x @ w_dec + b_enc, 0.0)
    recon_ref = feat_ref @ w_dec.T

    # 1) Auto-tiled path (small SAE -> tile_h == H, reduction axis dropped).
    feat, recon = sae_forward(x, w_dec, b_enc)
    jax.block_until_ready((feat, recon))
    assert feat.shape == (B, H) and recon.shape == (B, D)
    assert jnp.allclose(feat, feat_ref, rtol=2e-2, atol=1e-5), (
        float(jnp.max(jnp.abs(feat - feat_ref))))
    assert jnp.allclose(recon, recon_ref, rtol=2e-2, atol=1e-8), (
        float(jnp.max(jnp.abs(recon - recon_ref))))

    # 2) Forced H-tiled fallback path (exercises the accumulator kernel).
    feat_t, recon_t = sae_forward(x, w_dec, b_enc, tile_b=128, tile_h=128)
    jax.block_until_ready((feat_t, recon_t))
    assert jnp.allclose(feat_t, feat_ref, rtol=2e-2, atol=1e-5), (
        float(jnp.max(jnp.abs(feat_t - feat_ref))))
    assert jnp.allclose(recon_t, recon_ref, rtol=2e-2, atol=1e-8), (
        float(jnp.max(jnp.abs(recon_t - recon_ref))))

    # 3) Optional bf16 compute path (halves weight/activation traffic; MXU
    #    still accumulates in f32).  Loose, scale-normalized check.
    feat_bf, recon_bf = sae_forward(x, w_dec, b_enc,
                                    compute_dtype=jnp.bfloat16)
    jax.block_until_ready((feat_bf, recon_bf))
    assert feat_bf.dtype == jnp.bfloat16 and recon_bf.dtype == jnp.bfloat16
    f32 = lambda a: a.astype(jnp.float32)
    assert bool(jnp.isfinite(f32(feat_bf)).all())
    assert bool(jnp.isfinite(f32(recon_bf)).all())
    nerr_f = float(jnp.max(jnp.abs(f32(feat_bf) - feat_ref))
                   / (jnp.max(jnp.abs(feat_ref)) + 1e-30))
    nerr_r = float(jnp.max(jnp.abs(f32(recon_bf) - recon_ref))
                   / (jnp.max(jnp.abs(recon_ref)) + 1e-30))
    assert nerr_f < 0.1 and nerr_r < 0.1, (nerr_f, nerr_r)

    print("KERNEL_OK")
</pallas_src>

<mosaic_0001>
module attributes {stable_mosaic.version = 11 : i64} {
  func.func @_sae_kernel_full(%arg0: i32, %arg1: memref<128x128xf32, #tpu.memory_space<vmem>>, %arg2: memref<128x256xf32, #tpu.memory_space<vmem>>, %arg3: memref<256x128xf32, #tpu.memory_space<vmem>>, %arg4: memref<1x256xf32, #tpu.memory_space<vmem>>, %arg5: memref<128x256xf32, #tpu.memory_space<vmem>>, %arg6: memref<128x128xf32, #tpu.memory_space<vmem>>) attributes {dimension_semantics = [#tpu.dimension_semantics<parallel>], iteration_bounds = array<i64: 2>, scalar_prefetch = 0 : i64, scratch_operands = 0 : i64, tpu.core_type = #tpu.core_type<tc>, window_params = [{transform_indices = @transform_0, window_bounds = array<i64: 128, 128>}, {pipeline_mode = #tpu.pipeline_mode<synchronous>, transform_indices = @transform_1, window_bounds = array<i64: 128, 256>}, {pipeline_mode = #tpu.pipeline_mode<synchronous>, transform_indices = @transform_2, window_bounds = array<i64: 256, 128>}, {pipeline_mode = #tpu.pipeline_mode<synchronous>, transform_indices = @transform_3, window_bounds = array<i64: 1, 256>}, {transform_indices = @transform_4, window_bounds = array<i64: 128, 256>}, {transform_indices = @transform_5, window_bounds = array<i64: 128, 128>}]} {
    %c0 = arith.constant 0 : index
    %c0_0 = arith.constant 0 : index
    %0 = vector.load %arg1[%c0, %c0_0] : memref<128x128xf32, #tpu.memory_space<vmem>>, vector<128x128xf32>
    %c0_1 = arith.constant 0 : index
    %c0_2 = arith.constant 0 : index
    %1 = vector.load %arg2[%c0_1, %c0_2] : memref<128x256xf32, #tpu.memory_space<vmem>>, vector<128x256xf32>
    %cst = arith.constant dense<0.000000e+00> : vector<128x256xf32>
    %2 = tpu.matmul %0, %1, %cst {dimension_numbers = #tpu.dot_dimension_numbers<[1], [0], [0], [1], [0, 0, 1, 1], [], []>} : vector<128x128xf32>, vector<128x256xf32>, vector<128x256xf32> -> vector<128x256xf32>
    %c0_3 = arith.constant 0 : index
    %c0_4 = arith.constant 0 : index
    %3 = vector.load %arg4[%c0_3, %c0_4] : memref<1x256xf32, #tpu.memory_space<vmem>>, vector<1x256xf32>
    %4 = vector.broadcast %3 : vector<1x256xf32> to vector<128x256xf32>
    %5 = arith.addf %2, %4 : vector<128x256xf32>
    %cst_5 = arith.constant 0.000000e+00 : f32
    %6 = vector.broadcast %cst_5 : f32 to vector<128x256xf32>
    %7 = arith.maximumf %5, %6 : vector<128x256xf32>
    %c0_6 = arith.constant 0 : index
    %c0_7 = arith.constant 0 : index
    %8 = vector.load %arg5[%c0_6, %c0_7] : memref<128x256xf32, #tpu.memory_space<vmem>>, vector<128x256xf32>
    tpu.vector_store %arg5[%c0_6, %c0_7], %7 {strides = array<i32>} : memref<128x256xf32, #tpu.memory_space<vmem>>, vector<128x256xf32>,
    %c0_8 = arith.constant 0 : index
    %c0_9 = arith.constant 0 : index
    %9 = vector.load %arg3[%c0_8, %c0_9] : memref<256x128xf32, #tpu.memory_space<vmem>>, vector<256x128xf32>
    %cst_10 = arith.constant dense<0.000000e+00> : vector<128x128xf32>
    %10 = tpu.matmul %7, %9, %cst_10 {dimension_numbers = #tpu.dot_dimension_numbers<[1], [0], [0], [1], [0, 0, 1, 1], [], []>} : vector<128x256xf32>, vector<256x128xf32>, vector<128x128xf32> -> vector<128x128xf32>
    %c0_11 = arith.constant 0 : index
    %c0_12 = arith.constant 0 : index
    %11 = vector.load %arg6[%c0_11, %c0_12] : memref<128x128xf32, #tpu.memory_space<vmem>>, vector<128x128xf32>
    tpu.vector_store %arg6[%c0_11, %c0_12], %10 {strides = array<i32>} : memref<128x128xf32, #tpu.memory_space<vmem>>, vector<128x128xf32>,
    return
  }
  func.func @transform_0(%arg0: i32) -> (i32, i32) {
    %c0_i32 = arith.constant 0 : i32
    %c0_i32_0 = arith.constant 0 : i32
    return %arg0, %c0_i32 : i32, i32
  }
  func.func @transform_1(%arg0: i32) -> (i32, i32) {
    %c0_i32 = arith.constant 0 : i32
    %c0_i32_0 = arith.constant 0 : i32
    %c0_i32_1 = arith.constant 0 : i32
    return %c0_i32, %c0_i32_0 : i32, i32
  }
  func.func @transform_2(%arg0: i32) -> (i32, i32) {
    %c0_i32 = arith.constant 0 : i32
    %c0_i32_0 = arith.constant 0 : i32
    %c0_i32_1 = arith.constant 0 : i32
    return %c0_i32, %c0_i32_0 : i32, i32
  }
  func.func @transform_3(%arg0: i32) -> (i32, i32) {
    %c0_i32 = arith.constant 0 : i32
    %c0_i32_0 = arith.constant 0 : i32
    %c0_i32_1 = arith.constant 0 : i32
    return %c0_i32, %c0_i32_0 : i32, i32
  }
  func.func @transform_4(%arg0: i32) -> (i32, i32) {
    %c0_i32 = arith.constant 0 : i32
    %c0_i32_0 = arith.constant 0 : i32
    return %arg0, %c0_i32 : i32, i32
  }
  func.func @transform_5(%arg0: i32) -> (i32, i32) {
    %c0_i32 = arith.constant 0 : i32
    %c0_i32_0 = arith.constant 0 : i32
    return %arg0, %c0_i32 : i32, i32
  }
}

</mosaic_0001>

<llo_original>
// kernel: tpu_custom_call.1
$region0: #{tpu_custom_call.1}
  #allocation0 [shape = 'u32[]', space=smem, size = 0x4, offset = 0x4, fixed_abs, tag = 'smem constant byte address 0x4 - core index']
  #allocation1 [shape = 'u32[144,128]{1,0:T(1,128)}', space=vmem, size = 0x12000, scoped, tag = 'internal scratch']
  %s0 = inlined_call_operand.hbm [shape: f32[256,128], index: 0, kind: input, shape index: {}]
  %s1 = inlined_call_operand.hbm [shape: f32[128,256], index: 1, kind: input, shape index: {}]
  %s2 = inlined_call_operand.hbm [shape: f32[256,128], index: 2, kind: input, shape index: {}]
  %s3 = inlined_call_operand.vmem [shape: f32[1,256], index: 3, kind: input, shape index: {}]
  %s4 = inlined_call_operand.hbm [shape: f32[256,256], index: 4, kind: output, shape index: {0}]
  %s5 = inlined_call_operand.hbm [shape: f32[256,128], index: 5, kind: output, shape index: {1}]
  %6 = xla_tuple %s4, %s5
  %s7 = sld [smem:[#allocation0]]
  $region69: #{tpu_custom_call.1} parent=0
    _
  %s9 = ssub.s32 1, %s7
  %s10 = scalar_select 0, %s9, %s7
  $region1: #{tpu_custom_call.1} parent=0
    #allocation2 [shape = 'u8[131072]{0}', space=vmem, size = 0x20000, scoped, tag = 'input window, operand 0']
    #allocation3 [shape = 's32[2]{0}', space=sflag, size = 0x8, scoped, tag = 'scoped memory for tpu_custom_call.1']
    #allocation4 [shape = 's32[2]{0}', space=sflag, size = 0x8, scoped, tag = 'scoped memory for tpu_custom_call.1']
    #allocation5 [shape = 'u8[131072]{0}', space=vmem, size = 0x20000, scoped, tag = 'input window, operand 1, single buffered']
    #allocation6 [shape = 's32[1]{0}', space=sflag, size = 0x4, scoped, tag = 'scoped memory for tpu_custom_call.1']
    #allocation7 [shape = 'u8[131072]{0}', space=vmem, size = 0x20000, scoped, tag = 'input window, operand 2, single buffered']
    #allocation8 [shape = 'u8[262144]{0}', space=vmem, size = 0x40000, scoped, tag = 'output window, operand 0']
    #allocation9 [shape = 'u8[131072]{0}', space=vmem, size = 0x20000, scoped, tag = 'output window, operand 1']
    #allocation10 [shape = 's32[2]{0}', space=sflag, size = 0x8, scoped, tag = 'scoped memory for tpu_custom_call.1']
    %11 = vsyncpa [#allocation3], 0
    %s12 = scalar_lea.sflag [#allocation3], 1
    %13 = vsyncpa %s12, 0
    %14 = vsyncpa [#allocation6], 0
    %15 = vsyncpa [#allocation4], 0
    %s16 = scalar_lea.sflag [#allocation4], 1
    %17 = vsyncpa %s16, 0
    %18 = vsyncpa [#allocation10], 0
    %s19 = scalar_lea.sflag [#allocation10], 1
    %20 = vsyncpa %s19, 0
    loop: start=0, step=1, limit=4
    $region2: #{tpu_custom_call.1} parent=1 // loop_pre_header
      _
    $region3: #{tpu_custom_call.1} parent=1 // loop_header
      %s22 = sphi 0, %s26
      %p23 = scmp.ge.s32.totalorder %s22, 4
      %s32 = sphi 0, %s34
      %s35 = sphi 0, %s32
      %s36 = sphi 0, %s35
      %s52 = sphi 0, %s36
      %s56 = sphi 0, %s56
      %s58 = sphi 0, %s56
      %s59 = sphi 0, %s58
      %s73 = sphi 0, %s59
      %s77 = sphi 0, %s77
      %s79 = sphi 0, %s77
      %s80 = sphi 0, %s79
      %s94 = sphi 0, %s80
      %s98 = sphi 0, %s98
      %s100 = sphi 0, %s98
      %s101 = sphi 0, %s100
      %s115 = sphi 0, %s101
      %s121 = sphi 0, %s123
      %s124 = sphi 0, %s121
      %s125 = sphi 0, %s124
      %s141 = sphi 0, %s125
      %s147 = sphi 0, %s149
      %s150 = sphi 0, %s147
      %s151 = sphi 0, %s150
      %s167 = sphi 0, %s151
    $region4: #{tpu_custom_call.1} parent=1 // loop_header_branch
      %25 = sbr.rel (%p23) target = $region8
    $region5: #{tpu_custom_call.1} parent=1 // loop_body
      %s27 = ssub.s32 %s22, 1
      %s28 = ssub.s32 %s22, 2
      %s29 = sadd.s32 %s22, 1
      %s30 = ssub.s32 %s22, %s29
      %p31 = scmp.eq.s32.totalorder %s30, 0
      %s33 = sadd.s32 %s32, 1
      %s34 = scalar_select %p31, %s32, %s33
      %p37 = pneg %p31
      %p38 = scmp.eq.s32.totalorder %s22, 1
      %p39 = por %p37, %p38
      %p40 = scmp.ne.s32.totalorder %s32, %s35
      %p41 = scmp.eq.s32.totalorder %s22, 0
      %p42 = por %p40, %p41
      %p43 = scmp.ne.s32.totalorder %s32, %s35
      %p44 = scmp.eq.s32.totalorder %s27, 1
      %p45 = por %p43, %p44
      %p46 = scmp.ne.s32.totalorder %s35, %s36
      %p47 = scmp.eq.s32.totalorder %s27, 0
      %p48 = por %p46, %p47
      %p49 = scmp.ne.s32.totalorder %s35, %s36
      %p50 = scmp.eq.s32.totalorder %s28, 1
      %p51 = por %p49, %p50
      %p53 = scmp.ne.s32.totalorder %s36, %s52
      %p54 = scmp.eq.s32.totalorder %s28, 0
      %p55 = por %p53, %p54
      %s57 = sadd.s32 %s56, 1
      %p60 = scmp.eq.s32.totalorder %s22, 1
      %p61 = scmp.ne.s32.totalorder %s56, %s58
      %p62 = scmp.eq.s32.totalorder %s22, 0
      %p63 = por %p61, %p62
      %p64 = scmp.ne.s32.totalorder %s56, %s58
      %p65 = scmp.eq.s32.totalorder %s27, 1
      %p66 = por %p64, %p65
      %p67 = scmp.ne.s32.totalorder %s58, %s59
      %p68 = scmp.eq.s32.totalorder %s27, 0
      %p69 = por %p67, %p68
      %p70 = scmp.ne.s32.totalorder %s58, %s59
      %p71 = scmp.eq.s32.totalorder %s28, 1
      %p72 = por %p70, %p71
      %p74 = scmp.ne.s32.totalorder %s59, %s73
      %p75 = scmp.eq.s32.totalorder %s28, 0
      %p76 = por %p74, %p75
      %s78 = sadd.s32 %s77, 1
      %p81 = scmp.eq.s32.totalorder %s22, 1
      %p82 = scmp.ne.s32.totalorder %s77, %s79
      %p83 = scmp.eq.s32.totalorder %s22, 0
      %p84 = por %p82, %p83
      %p85 = scmp.ne.s32.totalorder %s77, %s79
      %p86 = scmp.eq.s32.totalorder %s27, 1
      %p87 = por %p85, %p86
      %p88 = scmp.ne.s32.totalorder %s79, %s80
      %p89 = scmp.eq.s32.totalorder %s27, 0
      %p90 = por %p88, %p89
      %p91 = scmp.ne.s32.totalorder %s79, %s80
      %p92 = scmp.eq.s32.totalorder %s28, 1
      %p93 = por %p91, %p92
      %p95 = scmp.ne.s32.totalorder %s80, %s94
      %p96 = scmp.eq.s32.totalorder %s28, 0
      %p97 = por %p95, %p96
      %s99 = sadd.s32 %s98, 1
      %p102 = scmp.eq.s32.totalorder %s22, 1
      %p103 = scmp.ne.s32.totalorder %s98, %s100
      %p104 = scmp.eq.s32.totalorder %s22, 0
      %p105 = por %p103, %p104
      %p106 = scmp.ne.s32.totalorder %s98, %s100
      %p107 = scmp.eq.s32.totalorder %s27, 1
      %p108 = por %p106, %p107
      %p109 = scmp.ne.s32.totalorder %s100, %s101
      %p110 = scmp.eq.s32.totalorder %s27, 0
      %p111 = por %p109, %p110
      %p112 = scmp.ne.s32.totalorder %s100, %s101
      %p113 = scmp.eq.s32.totalorder %s28, 1
      %p114 = por %p112, %p113
      %p116 = scmp.ne.s32.totalorder %s101, %s115
      %p117 = scmp.eq.s32.totalorder %s28, 0
      %p118 = por %p116, %p117
      %s119 = ssub.s32 %s22, %s29
      %p120 = scmp.eq.s32.totalorder %s119, 0
      %s122 = sadd.s32 %s121, 1
      %s123 = scalar_select %p120, %s121, %s122
      %p126 = pneg %p120
      %p127 = scmp.eq.s32.totalorder %s22, 1
      %p128 = por %p126, %p127
      %p129 = scmp.ne.s32.totalorder %s121, %s124
      %p130 = scmp.eq.s32.totalorder %s22, 0
      %p131 = por %p129, %p130
      %p132 = scmp.ne.s32.totalorder %s121, %s124
      %p133 = scmp.eq.s32.totalorder %s27, 1
      %p134 = por %p132, %p133
      %p135 = scmp.ne.s32.totalorder %s124, %s125
      %p136 = scmp.eq.s32.totalorder %s27, 0
      %p137 = por %p135, %p136
      %p138 = scmp.ne.s32.totalorder %s124, %s125
      %p139 = scmp.eq.s32.totalorder %s28, 1
      %p140 = por %p138, %p139
      %p142 = scmp.ne.s32.totalorder %s125, %s141
      %p143 = scmp.eq.s32.totalorder %s28, 0
      %p144 = por %p142, %p143
      %s145 = ssub.s32 %s22, %s29
      %p146 = scmp.eq.s32.totalorder %s145, 0
      %s148 = sadd.s32 %s147, 1
      %s149 = scalar_select %p146, %s147, %s148
      %p152 = pneg %p146
      %p153 = scmp.eq.s32.totalorder %s22, 1
      %p154 = por %p152, %p153
      %p155 = scmp.ne.s32.totalorder %s147, %s150
      %p156 = scmp.eq.s32.totalorder %s22, 0
      %p157 = por %p155, %p156
      %p158 = scmp.ne.s32.totalorder %s147, %s150
      %p159 = scmp.eq.s32.totalorder %s27, 1
      %p160 = por %p158, %p159
      %p161 = scmp.ne.s32.totalorder %s150, %s151
      %p162 = scmp.eq.s32.totalorder %s27, 0
      %p163 = por %p161, %p162
      %p164 = scmp.ne.s32.totalorder %s150, %s151
      %p165 = scmp.eq.s32.totalorder %s28, 1
      %p166 = por %p164, %p165
      %p168 = scmp.ne.s32.totalorder %s151, %s167
      %p169 = scmp.eq.s32.totalorder %s28, 0
      %p170 = por %p168, %p169
      %p171 = scmp.le.s32.totalorder 1, %s22
      %p172 = scmp.lt.s32.totalorder %s22, 3
      %p173 = pnand %p171, %p172
      %p174 = pneg %p173
      // Predicated region
      $region9: #{tpu_custom_call.1} parent=5 // pred_check
        _
      $region10: #{tpu_custom_call.1} parent=5 // pred_check_branch
        %176 = sbr.rel (%p173) target = $region12
      $region11: #{tpu_custom_call.1} parent=5 // pred_region
        %s177 = ssub.s32 %s22, 1
        // Predicated region
        $region13: #{tpu_custom_call.1} parent=11 // pred_check
          %p178 = pneg %p69
        $region14: #{tpu_custom_call.1} parent=11 // pred_check_branch
          %180 = sbr.rel (%p178) target = $region16
        $region15: #{tpu_custom_call.1} parent=11 // pred_region
          %s182 = ssub.s32 4096, 4096
          %183 = vsyncadd [#allocation6], %s182
          %s184 = sshll.u32 [#allocation5], 4
          %s185 = int_to_ptr.vmem [resolvable:$true] %s184
          %190 = dma.hbm_to_vmem [thread:$0]  %s1, 4096, %s185, [#allocation6], 256, 256, 16
        $region16: #{tpu_custom_call.1} parent=11 // pred_fallthru
          _
        // Predicated region
        $region17: #{tpu_custom_call.1} parent=11 // pred_check
          %p191 = pneg %p90
        $region18: #{tpu_custom_call.1} parent=11 // pred_check_branch
          %193 = sbr.rel (%p191) target = $region20
        $region19: #{tpu_custom_call.1} parent=11 // pred_region
          %s195 = ssub.s32 4096, 4096
          %196 = vsyncadd [#allocation6], %s195
          %s197 = sshll.u32 [#allocation7], 4
          %s198 = int_to_ptr.vmem [resolvable:$true] %s197
          %203 = dma.hbm_to_vmem [thread:$0]  %s2, 4096, %s198, [#allocation6], 128, 128, 8
        $region20: #{tpu_custom_call.1} parent=11 // pred_fallthru
          _
        // Predicated region
        $region21: #{tpu_custom_call.1} parent=11 // pred_check
          %p204 = pneg %p111
        $region22: #{tpu_custom_call.1} parent=11 // pred_check_branch
          %206 = sbr.rel (%p204) target = $region24
        $region23: #{tpu_custom_call.1} parent=11 // pred_region
          _
        $region24: #{tpu_custom_call.1} parent=11 // pred_fallthru
          _
      $region12: #{tpu_custom_call.1} parent=5 // pred_fallthru
        _
      %p207 = scmp.lt.s32.totalorder %s22, 2
      // Predicated region
      $region25: #{tpu_custom_call.1} parent=5 // pred_check
        %p208 = pneg %p207
      $region26: #{tpu_custom_call.1} parent=5 // pred_check_branch
        %210 = sbr.rel (%p208) target = $region28
      $region27: #{tpu_custom_call.1} parent=5 // pred_region
        // Predicated region
        $region29: #{tpu_custom_call.1} parent=27 // pred_check
          %p211 = pneg %p42
        $region30: #{tpu_custom_call.1} parent=27 // pred_check_branch
          %213 = sbr.rel (%p211) target = $region32
        $region31: #{tpu_custom_call.1} parent=27 // pred_region
          %s214 = sand.u32 %s32, 1
          %s215 = scalar_lea.sflag [#allocation3], %s214
          %s216 = sand.u32 %s32, 1
          %s217 = smul.addr %s216, 128
          %s218 = scalar_lea.vmem [#allocation2], %s217
          %s219 = smul.u32 16, %s22
          %s221 = ssub.s32 2048, 2048
          %222 = vsyncadd %s215, %s221
          %s223 = smul.addr %s219, 128
          %s224 = scalar_lea.hbm %s0, %s223
          %s225 = sshll.u32 %s218, 4
          %s226 = int_to_ptr.vmem [resolvable:$true] %s225
          %231 = dma.hbm_to_vmem [thread:$0]  %s224, 2048, %s226, %s215, 128, 128, 8
        $region32: #{tpu_custom_call.1} parent=27 // pred_fallthru
          _
      $region28: #{tpu_custom_call.1} parent=5 // pred_fallthru
        _
      %p232 = scmp.le.s32.totalorder 1, %s22
      %p233 = scmp.lt.s32.totalorder %s22, 3
      %p234 = pnand %p232, %p233
      %p235 = pneg %p234
      // Predicated region
      $region33: #{tpu_custom_call.1} parent=5 // pred_check
        _
      $region34: #{tpu_custom_call.1} parent=5 // pred_check_branch
        %237 = sbr.rel (%p234) target = $region36
      $region35: #{tpu_custom_call.1} parent=5 // pred_region
        %s238 = ssub.s32 %s22, 1
        %s239 = sand.u32 %s35, 1
        %s240 = scalar_lea.sflag [#allocation3], %s239
        %s241 = sand.u32 %s35, 1
        %s242 = smul.addr %s241, 128
        %s243 = scalar_lea.vmem [#allocation2], %s242
        // Predicated region
        $region37: #{tpu_custom_call.1} parent=35 // pred_check
          %p244 = pneg %p48
        $region38: #{tpu_custom_call.1} parent=35 // pred_check_branch
          %246 = sbr.rel (%p244) target = $region40
        $region39: #{tpu_custom_call.1} parent=35 // pred_region
          %247 = dma.done %s240, 2048
        $region40: #{tpu_custom_call.1} parent=35 // pred_fallthru
          _
        // Predicated region
        $region41: #{tpu_custom_call.1} parent=35 // pred_check
          %p248 = pneg %p69
        $region42: #{tpu_custom_call.1} parent=35 // pred_check_branch
          %250 = sbr.rel (%p248) target = $region44
        $region43: #{tpu_custom_call.1} parent=35 // pred_region
          %251 = dma.done [#allocation6], 4096
        $region44: #{tpu_custom_call.1} parent=35 // pred_fallthru
          _
        // Predicated region
        $region45: #{tpu_custom_call.1} parent=35 // pred_check
          %p252 = pneg %p90
        $region46: #{tpu_custom_call.1} parent=35 // pred_check_branch
          %254 = sbr.rel (%p252) target = $region48
        $region47: #{tpu_custom_call.1} parent=35 // pred_region
          %255 = dma.done [#allocation6], 4096
        $region48: #{tpu_custom_call.1} parent=35 // pred_fallthru
          _
        %s256 = sand.u32 %s35, 1
        %s257 = scalar_lea.sflag [#allocation3], %s256
        %s258 = sand.u32 %s35, 1
        %s259 = smul.addr %s258, 128
        %s260 = scalar_lea.vmem [#allocation2], %s259
        %p261 = pneg %p48
        %p262 = pneg %p45
        %p263 = pneg %p69
        %p264 = pneg %p66
        %p265 = pneg %p90
        %p266 = pneg %p87
        %p267 = pneg %p111
        %p268 = pneg %p108
        %p269 = pneg %p137
        %p270 = pneg %p134
        %s271 = sand.u32 %s124, 1
        %s272 = scalar_lea.sflag [#allocation4], %s271
        %s273 = sand.u32 %s124, 1
        %s274 = smul.addr %s273, 256
        %s275 = scalar_lea.vmem [#allocation8], %s274
        %p276 = pneg %p163
        %p277 = pneg %p160
        %s278 = sand.u32 %s150, 1
        %s279 = scalar_lea.sflag [#allocation10], %s278
        %s280 = sand.u32 %s150, 1
        %s281 = smul.addr %s280, 128
        %s282 = scalar_lea.vmem [#allocation9], %s281
        %s283 = smul.u32 16, %s27
        %s284 = smul.u32 16, %s27
        %s285 = smul.u32 16, %s27
        %v286 = vld [vmem:[%s243] sm:$0xff]
        %v287 = vld [vmem:[%s243 + $0x8] sm:$0xff]
        %v288 = vld [vmem:[%s243 + $0x10] sm:$0xff]
        %v289 = vld [vmem:[%s243 + $0x18] sm:$0xff]
        %v290 = vld [vmem:[%s243 + $0x20] sm:$0xff]
        %v291 = vld [vmem:[%s243 + $0x28] sm:$0xff]
        %v292 = vld [vmem:[%s243 + $0x30] sm:$0xff]
        %v293 = vld [vmem:[%s243 + $0x38] sm:$0xff]
        %v294 = vld [vmem:[%s243 + $0x40] sm:$0xff]
        %v295 = vld [vmem:[%s243 + $0x48] sm:$0xff]
        %v296 = vld [vmem:[%s243 + $0x50] sm:$0xff]
        %v297 = vld [vmem:[%s243 + $0x58] sm:$0xff]
        %v298 = vld [vmem:[%s243 + $0x60] sm:$0xff]
        %v299 = vld [vmem:[%s243 + $0x68] sm:$0xff]
        %v300 = vld [vmem:[%s243 + $0x70] sm:$0xff]
        %v301 = vld [vmem:[%s243 + $0x78] sm:$0xff]
        %v302 = vld [vmem:[#allocation5] sm:$0xff]
        %v303 = vld [vmem:[#allocation5 + $0x8] sm:$0xff]
        %v304 = vld [vmem:[#allocation5 + $0x10] sm:$0xff]
        %v305 = vld [vmem:[#allocation5 + $0x18] sm:$0xff]
        %v306 = vld [vmem:[#allocation5 + $0x20] sm:$0xff]
        %v307 = vld [vmem:[#allocation5 + $0x28] sm:$0xff]
        %v308 = vld [vmem:[#allocation5 + $0x30] sm:$0xff]
        %v309 = vld [vmem:[#allocation5 + $0x38] sm:$0xff]
        %v310 = vld [vmem:[#allocation5 + $0x40] sm:$0xff]
        %v311 = vld [vmem:[#allocation5 + $0x48] sm:$0xff]
        %v312 = vld [vmem:[#allocation5 + $0x50] sm:$0xff]
        %v313 = vld [vmem:[#allocation5 + $0x58] sm:$0xff]
        %v314 = vld [vmem:[#allocation5 + $0x60] sm:$0xff]
        %v315 = vld [vmem:[#allocation5 + $0x68] sm:$0xff]
        %v316 = vld [vmem:[#allocation5 + $0x70] sm:$0xff]
        %v317 = vld [vmem:[#allocation5 + $0x78] sm:$0xff]
        %v318 = vld [vmem:[#allocation5 + $0x80] sm:$0xff]
        %v319 = vld [vmem:[#allocation5 + $0x88] sm:$0xff]
        %v320 = vld [vmem:[#allocation5 + $0x90] sm:$0xff]
        %v321 = vld [vmem:[#allocation5 + $0x98] sm:$0xff]
        %v322 = vld [vmem:[#allocation5 + $0xa0] sm:$0xff]
        %v323 = vld [vmem:[#allocation5 + $0xa8] sm:$0xff]
        %v324 = vld [vmem:[#allocation5 + $0xb0] sm:$0xff]
        %v325 = vld [vmem:[#allocation5 + $0xb8] sm:$0xff]
        %v326 = vld [vmem:[#allocation5 + $0xc0] sm:$0xff]
        %v327 = vld [vmem:[#allocation5 + $0xc8] sm:$0xff]
        %v328 = vld [vmem:[#allocation5 + $0xd0] sm:$0xff]
        %v329 = vld [vmem:[#allocation5 + $0xd8] sm:$0xff]
        %v330 = vld [vmem:[#allocation5 + $0xe0] sm:$0xff]
        %v331 = vld [vmem:[#allocation5 + $0xe8] sm:$0xff]
        %v332 = vld [vmem:[#allocation5 + $0xf0] sm:$0xff]
        %v333 = vld [vmem:[#allocation5 + $0xf8] sm:$0xff]
        %v334 = vld [vmem:[%s3] sm:$0x3]
        %v336 = vlaneseq
        %v337 = vshrl.u32 %v336, 7
        %v338 = vsub.s32 0, %v337
        %v339 = vrot.slane %v334, %v338
        %v340 = vlaneseq
        %v341 = vshrl.u32 %v340, 7
        %v342 = vsub.s32 1, %v341
        %v343 = vrot.slane %v334, %v342
        %346 = vmatprep.subr.mxu0 %v303
        %347 = vmatpush1.msra.mxu0 %v302
        %348 = vmatprep.subr.mxu0 %v305
        %349 = vmatpush1.msra.mxu0 %v304
        %350 = vmatprep.subr.mxu0 %v307
        %351 = vmatpush1.msra.mxu0 %v306
        %352 = vmatprep.subr.mxu0 %v309
        %353 = vmatpush1.msra.mxu0 %v308
        %354 = vmatprep.subr.mxu0 %v311
        %355 = vmatpush1.msra.mxu0 %v310
        %356 = vmatprep.subr.mxu0 %v313
        %357 = vmatpush1.msra.mxu0 %v312
        %358 = vmatprep.subr.mxu0 %v315
        %359 = vmatpush1.msra.mxu0 %v314
        %360 = vmatprep.subr.mxu0 %v317
        %361 = vmatpush1.msra.mxu0 %v316
        %362 = vmatprep.subr.mxu0 %v319
        %363 = vmatpush1.msra.mxu0 %v318
        %364 = vmatprep.subr.mxu0 %v321
        %365 = vmatpush1.msra.mxu0 %v320
        %366 = vmatprep.subr.mxu0 %v323
        %367 = vmatpush1.msra.mxu0 %v322
        %368 = vmatprep.subr.mxu0 %v325
        %369 = vmatpush1.msra.mxu0 %v324
        %370 = vmatprep.subr.mxu0 %v327
        %371 = vmatpush1.msra.mxu0 %v326
        %372 = vmatprep.subr.mxu0 %v329
        %373 = vmatpush1.msra.mxu0 %v328
        %374 = vmatprep.subr.mxu0 %v331
        %375 = vmatpush1.msra.mxu0 %v330
        %376 = vmatprep.subr.mxu0 %v333
        %377 = vmatpush1.msra.mxu0 %v332
        %378 = vmatprep.subr.mxu0 0.0
        %379 = vmatpush1.msra.mxu0 0.0
        %380 = vmatprep.subr.mxu0 0.0
        %381 = vmatpush1.msra.mxu0 0.0
        %382 = vmatprep.subr.mxu0 0.0
        %383 = vmatpush1.msra.mxu0 0.0
        %384 = vmatprep.subr.mxu0 0.0
        %385 = vmatpush1.msra.mxu0 0.0
        %386 = vmatprep.subr.mxu0 0.0
        %387 = vmatpush1.msra.mxu0 0.0
        %388 = vmatprep.subr.mxu0 0.0
        %389 = vmatpush1.msra.mxu0 0.0
        %390 = vmatprep.subr.mxu0 0.0
        %391 = vmatpush1.msra.mxu0 0.0
        %392 = vmatprep.subr.mxu0 0.0
        %393 = vmatpush1.msra.mxu0 0.0
        %394 = vmatprep.subr.mxu0 0.0
        %395 = vmatpush1.msra.mxu0 0.0
        %396 = vmatprep.subr.mxu0 0.0
        %397 = vmatpush1.msra.mxu0 0.0
        %398 = vmatprep.subr.mxu0 0.0
        %399 = vmatpush1.msra.mxu0 0.0
        %400 = vmatprep.subr.mxu0 0.0
        %401 = vmatpush1.msra.mxu0 0.0
        %402 = vmatprep.subr.mxu0 0.0
        %403 = vmatpush1.msra.mxu0 0.0
        %404 = vmatprep.subr.mxu0 0.0
        %405 = vmatpush1.msra.mxu0 0.0
        %406 = vmatprep.subr.mxu0 0.0
        %407 = vmatpush1.msra.mxu0 0.0
        %408 = vmatprep.subr.mxu0 0.0
        %409 = vmatpush1.msra.mxu0 0.0
        %410 = vmatprep.mubr.f32.mxu0 0.0
        %411 = vmatmul.mubr.f32.gmra.mrb[0].mxu0 %v286
        %v412 = vpop.f32.mrb[0].mxu0
        %v413 = vadd.f32 %v339, %v412
        %v414 = vpop.f32.mrb[0].mxu0
        %v415 = vadd.f32 %v343, %v414
        %416 = vmatprep.mubr.f32.mxu0 0.0
        %417 = vmatmul.mubr.f32.gmra.mrb[0].mxu0 %v287
        %v418 = vpop.f32.mrb[0].mxu0
        %v419 = vadd.f32 %v339, %v418
        %v420 = vpop.f32.mrb[0].mxu0
        %v421 = vadd.f32 %v343, %v420
        %422 = vmatprep.mubr.f32.mxu0 0.0
        %423 = vmatmul.mubr.f32.gmra.mrb[0].mxu0 %v288
        %v424 = vpop.f32.mrb[0].mxu0
        %v425 = vadd.f32 %v339, %v424
        %v426 = vpop.f32.mrb[0].mxu0
        %v427 = vadd.f32 %v343, %v426
        %428 = vmatprep.mubr.f32.mxu0 0.0
        %429 = vmatmul.mubr.f32.gmra.mrb[0].mxu0 %v289
        %v430 = vpop.f32.mrb[0].mxu0
        %v431 = vadd.f32 %v339, %v430
        %v432 = vpop.f32.mrb[0].mxu0
        %v433 = vadd.f32 %v343, %v432
        %434 = vmatprep.mubr.f32.mxu0 0.0
        %435 = vmatmul.mubr.f32.gmra.mrb[0].mxu0 %v290
        %v436 = vpop.f32.mrb[0].mxu0
        %v437 = vadd.f32 %v339, %v436
        %v438 = vpop.f32.mrb[0].mxu0
        %v439 = vadd.f32 %v343, %v438
        %440 = vmatprep.mubr.f32.mxu0 0.0
        %441 = vmatmul.mubr.f32.gmra.mrb[0].mxu0 %v291
        %v442 = vpop.f32.mrb[0].mxu0
        %v443 = vadd.f32 %v339, %v442
        %v444 = vpop.f32.mrb[0].mxu0
        %v445 = vadd.f32 %v343, %v444
        %446 = vmatprep.mubr.f32.mxu0 0.0
        %447 = vmatmul.mubr.f32.gmra.mrb[0].mxu0 %v292
        %v448 = vpop.f32.mrb[0].mxu0
        %v449 = vadd.f32 %v339, %v448
        %v450 = vpop.f32.mrb[0].mxu0
        %v451 = vadd.f32 %v343, %v450
        %452 = vmatprep.mubr.f32.mxu0 0.0
        %453 = vmatmul.mubr.f32.gmra.mrb[0].mxu0 %v293
        %v454 = vpop.f32.mrb[0].mxu0
        %v455 = vadd.f32 %v339, %v454
        %v456 = vpop.f32.mrb[0].mxu0
        %v457 = vadd.f32 %v343, %v456
        %458 = vmatprep.mubr.f32.mxu0 0.0
        %459 = vmatmul.mubr.f32.gmra.mrb[0].mxu0 %v294
        %v460 = vpop.f32.mrb[0].mxu0
        %v461 = vadd.f32 %v339, %v460
        %v462 = vpop.f32.mrb[0].mxu0
        %v463 = vadd.f32 %v343, %v462
        %464 = vmatprep.mubr.f32.mxu0 0.0
        %465 = vmatmul.mubr.f32.gmra.mrb[0].mxu0 %v295
        %v466 = vpop.f32.mrb[0].mxu0
        %v467 = vadd.f32 %v339, %v466
        %v468 = vpop.f32.mrb[0].mxu0
        %v469 = vadd.f32 %v343, %v468
        %470 = vmatprep.mubr.f32.mxu0 0.0
        %471 = vmatmul.mubr.f32.gmra.mrb[0].mxu0 %v296
        %v472 = vpop.f32.mrb[0].mxu0
        %v473 = vadd.f32 %v339, %v472
        %v474 = vpop.f32.mrb[0].mxu0
        %v475 = vadd.f32 %v343, %v474
        %476 = vmatprep.mubr.f32.mxu0 0.0
        %477 = vmatmul.mubr.f32.gmra.mrb[0].mxu0 %v297
        %v478 = vpop.f32.mrb[0].mxu0
        %v479 = vadd.f32 %v339, %v478
        %v480 = vpop.f32.mrb[0].mxu0
        %v481 = vadd.f32 %v343, %v480
        %482 = vmatprep.mubr.f32.mxu0 0.0
        %483 = vmatmul.mubr.f32.gmra.mrb[0].mxu0 %v298
        %v484 = vpop.f32.mrb[0].mxu0
        %v485 = vadd.f32 %v339, %v484
        %v486 = vpop.f32.mrb[0].mxu0
        %v487 = vadd.f32 %v343, %v486
        %488 = vmatprep.mubr.f32.mxu0 0.0
        %489 = vmatmul.mubr.f32.gmra.mrb[0].mxu0 %v299
        %v490 = vpop.f32.mrb[0].mxu0
        %v491 = vadd.f32 %v339, %v490
        %v492 = vpop.f32.mrb[0].mxu0
        %v493 = vadd.f32 %v343, %v492
        %494 = vmatprep.mubr.f32.mxu0 0.0
        %495 = vmatmul.mubr.f32.gmra.mrb[0].mxu0 %v300
        %v496 = vpop.f32.mrb[0].mxu0
        %v497 = vadd.f32 %v339, %v496
        %v498 = vpop.f32.mrb[0].mxu0
        %v499 = vadd.f32 %v343, %v498
        %500 = vmatprep.mubr.f32.mxu0 0.0
        %501 = vmatmul.mubr.f32.gmra.mrb[0].mxu0 %v301
        %v502 = vpop.f32.mrb[0].mxu0
        %v503 = vadd.f32 %v339, %v502
        %v504 = vpop.f32.mrb[0].mxu0
        %v505 = vadd.f32 %v343, %v504
        %506 = vdwg.mxu0
        %v507 = vmax.f32 %v413, 0.0
        %v508 = vmax.f32 %v415, 0.0
        %v509 = vmax.f32 %v419, 0.0
        %v510 = vmax.f32 %v421, 0.0
        %v511 = vmax.f32 %v425, 0.0
        %v512 = vmax.f32 %v427, 0.0
        %v513 = vmax.f32 %v431, 0.0
        %v514 = vmax.f32 %v433, 0.0
        %v515 = vmax.f32 %v437, 0.0
        %v516 = vmax.f32 %v439, 0.0
        %v517 = vmax.f32 %v443, 0.0
        %v518 = vmax.f32 %v445, 0.0
        %v519 = vmax.f32 %v449, 0.0
        %v520 = vmax.f32 %v451, 0.0
        %v521 = vmax.f32 %v455, 0.0
        %v522 = vmax.f32 %v457, 0.0
        %v523 = vmax.f32 %v461, 0.0
        %v524 = vmax.f32 %v463, 0.0
        %v525 = vmax.f32 %v467, 0.0
        %v526 = vmax.f32 %v469, 0.0
        %v527 = vmax.f32 %v473, 0.0
        %v528 = vmax.f32 %v475, 0.0
        %v529 = vmax.f32 %v479, 0.0
        %v530 = vmax.f32 %v481, 0.0
        %v531 = vmax.f32 %v485, 0.0
        %v532 = vmax.f32 %v487, 0.0
        %v533 = vmax.f32 %v491, 0.0
        %v534 = vmax.f32 %v493, 0.0
        %v535 = vmax.f32 %v497, 0.0
        %v536 = vmax.f32 %v499, 0.0
        %v537 = vmax.f32 %v503, 0.0
        %v538 = vmax.f32 %v505, 0.0
        %539 = vst [vmem:[%s275] sm:$0xff] %v507
        %540 = vst [vmem:[%s275 + $0x8] sm:$0xff] %v508
        %541 = vst [vmem:[%s275 + $0x10] sm:$0xff] %v509
        %542 = vst [vmem:[%s275 + $0x18] sm:$0xff] %v510
        %543 = vst [vmem:[%s275 + $0x20] sm:$0xff] %v511
        %544 = vst [vmem:[%s275 + $0x28] sm:$0xff] %v512
        %545 = vst [vmem:[%s275 + $0x30] sm:$0xff] %v513
        %546 = vst [vmem:[%s275 + $0x38] sm:$0xff] %v514
        %547 = vst [vmem:[%s275 + $0x40] sm:$0xff] %v515
        %548 = vst [vmem:[%s275 + $0x48] sm:$0xff] %v516
        %549 = vst [vmem:[%s275 + $0x50] sm:$0xff] %v517
        %550 = vst [vmem:[%s275 + $0x58] sm:$0xff] %v518
        %551 = vst [vmem:[%s275 + $0x60] sm:$0xff] %v519
        %552 = vst [vmem:[%s275 + $0x68] sm:$0xff] %v520
        %553 = vst [vmem:[%s275 + $0x70] sm:$0xff] %v521
        %554 = vst [vmem:[%s275 + $0x78] sm:$0xff] %v522
        %555 = vst [vmem:[%s275 + $0x80] sm:$0xff] %v523
        %556 = vst [vmem:[%s275 + $0x88] sm:$0xff] %v524
        %557 = vst [vmem:[%s275 + $0x90] sm:$0xff] %v525
        %558 = vst [vmem:[%s275 + $0x98] sm:$0xff] %v526
        %559 = vst [vmem:[%s275 + $0xa0] sm:$0xff] %v527
        %560 = vst [vmem:[%s275 + $0xa8] sm:$0xff] %v528
        %561 = vst [vmem:[%s275 + $0xb0] sm:$0xff] %v529
        %562 = vst [vmem:[%s275 + $0xb8] sm:$0xff] %v530
        %563 = vst [vmem:[%s275 + $0xc0] sm:$0xff] %v531
        %564 = vst [vmem:[%s275 + $0xc8] sm:$0xff] %v532
        %565 = vst [vmem:[%s275 + $0xd0] sm:$0xff] %v533
        %566 = vst [vmem:[%s275 + $0xd8] sm:$0xff] %v534
        %567 = vst [vmem:[%s275 + $0xe0] sm:$0xff] %v535
        %568 = vst [vmem:[%s275 + $0xe8] sm:$0xff] %v536
        %569 = vst [vmem:[%s275 + $0xf0] sm:$0xff] %v537
        %570 = vst [vmem:[%s275 + $0xf8] sm:$0xff] %v538
        %v571 = vld [vmem:[#allocation7] sm:$0xff]
        %v572 = vld [vmem:[#allocation7 + $0x8] sm:$0xff]
        %v573 = vld [vmem:[#allocation7 + $0x10] sm:$0xff]
        %v574 = vld [vmem:[#allocation7 + $0x18] sm:$0xff]
        %v575 = vld [vmem:[#allocation7 + $0x20] sm:$0xff]
        %v576 = vld [vmem:[#allocation7 + $0x28] sm:$0xff]
        %v577 = vld [vmem:[#allocation7 + $0x30] sm:$0xff]
        %v578 = vld [vmem:[#allocation7 + $0x38] sm:$0xff]
        %v579 = vld [vmem:[#allocation7 + $0x40] sm:$0xff]
        %v580 = vld [vmem:[#allocation7 + $0x48] sm:$0xff]
        %v581 = vld [vmem:[#allocation7 + $0x50] sm:$0xff]
        %v582 = vld [vmem:[#allocation7 + $0x58] sm:$0xff]
        %v583 = vld [vmem:[#allocation7 + $0x60] sm:$0xff]
        %v584 = vld [vmem:[#allocation7 + $0x68] sm:$0xff]
        %v585 = vld [vmem:[#allocation7 + $0x70] sm:$0xff]
        %v586 = vld [vmem:[#allocation7 + $0x78] sm:$0xff]
        %v587 = vld [vmem:[#allocation7 + $0x80] sm:$0xff]
        %v588 = vld [vmem:[#allocation7 + $0x88] sm:$0xff]
        %v589 = vld [vmem:[#allocation7 + $0x90] sm:$0xff]
        %v590 = vld [vmem:[#allocation7 + $0x98] sm:$0xff]
        %v591 = vld [vmem:[#allocation7 + $0xa0] sm:$0xff]
        %v592 = vld [vmem:[#allocation7 + $0xa8] sm:$0xff]
        %v593 = vld [vmem:[#allocation7 + $0xb0] sm:$0xff]
        %v594 = vld [vmem:[#allocation7 + $0xb8] sm:$0xff]
        %v595 = vld [vmem:[#allocation7 + $0xc0] sm:$0xff]
        %v596 = vld [vmem:[#allocation7 + $0xc8] sm:$0xff]
        %v597 = vld [vmem:[#allocation7 + $0xd0] sm:$0xff]
        %v598 = vld [vmem:[#allocation7 + $0xd8] sm:$0xff]
        %v599 = vld [vmem:[#allocation7 + $0xe0] sm:$0xff]
        %v600 = vld [vmem:[#allocation7 + $0xe8] sm:$0xff]
        %v601 = vld [vmem:[#allocation7 + $0xf0] sm:$0xff]
        %v602 = vld [vmem:[#allocation7 + $0xf8] sm:$0xff]
        %603 = vmatprep.subr.mxu0 0.0
        %604 = vmatpush1.msra.mxu0 %v571
        %605 = vmatprep.subr.mxu0 0.0
        %606 = vmatpush1.msra.mxu0 %v572
        %607 = vmatprep.subr.mxu0 0.0
        %608 = vmatpush1.msra.mxu0 %v573
        %609 = vmatprep.subr.mxu0 0.0
        %610 = vmatpush1.msra.mxu0 %v574
        %611 = vmatprep.subr.mxu0 0.0
        %612 = vmatpush1.msra.mxu0 %v575
        %613 = vmatprep.subr.mxu0 0.0
        %614 = vmatpush1.msra.mxu0 %v576
        %615 = vmatprep.subr.mxu0 0.0
        %616 = vmatpush1.msra.mxu0 %v577
        %617 = vmatprep.subr.mxu0 0.0
        %618 = vmatpush1.msra.mxu0 %v578
        %619 = vmatprep.subr.mxu0 0.0
        %620 = vmatpush1.msra.mxu0 %v579
        %621 = vmatprep.subr.mxu0 0.0
        %622 = vmatpush1.msra.mxu0 %v580
        %623 = vmatprep.subr.mxu0 0.0
        %624 = vmatpush1.msra.mxu0 %v581
        %625 = vmatprep.subr.mxu0 0.0
        %626 = vmatpush1.msra.mxu0 %v582
        %627 = vmatprep.subr.mxu0 0.0
        %628 = vmatpush1.msra.mxu0 %v583
        %629 = vmatprep.subr.mxu0 0.0
        %630 = vmatpush1.msra.mxu0 %v584
        %631 = vmatprep.subr.mxu0 0.0
        %632 = vmatpush1.msra.mxu0 %v585
        %633 = vmatprep.subr.mxu0 0.0
        %634 = vmatpush1.msra.mxu0 %v586
        %635 = vmatprep.subr.mxu0 0.0
        %636 = vmatpush1.msra.mxu0 %v587
        %637 = vmatprep.subr.mxu0 0.0
        %638 = vmatpush1.msra.mxu0 %v588
        %639 = vmatprep.subr.mxu0 0.0
        %640 = vmatpush1.msra.mxu0 %v589
        %641 = vmatprep.subr.mxu0 0.0
        %642 = vmatpush1.msra.mxu0 %v590
        %643 = vmatprep.subr.mxu0 0.0
        %644 = vmatpush1.msra.mxu0 %v591
        %645 = vmatprep.subr.mxu0 0.0
        %646 = vmatpush1.msra.mxu0 %v592
        %647 = vmatprep.subr.mxu0 0.0
        %648 = vmatpush1.msra.mxu0 %v593
        %649 = vmatprep.subr.mxu0 0.0
        %650 = vmatpush1.msra.mxu0 %v594
        %651 = vmatprep.subr.mxu0 0.0
        %652 = vmatpush1.msra.mxu0 %v595
        %653 = vmatprep.subr.mxu0 0.0
        %654 = vmatpush1.msra.mxu0 %v596
        %655 = vmatprep.subr.mxu0 0.0
        %656 = vmatpush1.msra.mxu0 %v597
        %657 = vmatprep.subr.mxu0 0.0
        %658 = vmatpush1.msra.mxu0 %v598
        %659 = vmatprep.subr.mxu0 0.0
        %660 = vmatpush1.msra.mxu0 %v599
        %661 = vmatprep.subr.mxu0 0.0
        %662 = vmatpush1.msra.mxu0 %v600
        %663 = vmatprep.subr.mxu0 0.0
        %664 = vmatpush1.msra.mxu0 %v601
        %665 = vmatprep.subr.mxu0 0.0
        %666 = vmatpush1.msra.mxu0 %v602
        %667 = vmatprep.mubr.f32.mxu0 %v508
        %668 = vmatmul.mubr.f32.gmra.mrb[0].mxu0 %v507
        %v669 = vpop.f32.mrb[0].mxu0
        %v670 = vadd.f32 0.0, %v669
        %v671 = vpop.f32.mrb[0].mxu0
        %672 = vmatprep.mubr.f32.mxu0 %v510
        %673 = vmatmul.mubr.f32.gmra.mrb[0].mxu0 %v509
        %v674 = vpop.f32.mrb[0].mxu0
        %v675 = vadd.f32 0.0, %v674
        %v676 = vpop.f32.mrb[0].mxu0
        %677 = vmatprep.mubr.f32.mxu0 %v512
        %678 = vmatmul.mubr.f32.gmra.mrb[0].mxu0 %v511
        %v679 = vpop.f32.mrb[0].mxu0
        %v680 = vadd.f32 0.0, %v679
        %v681 = vpop.f32.mrb[0].mxu0
        %682 = vmatprep.mubr.f32.mxu0 %v514
        %683 = vmatmul.mubr.f32.gmra.mrb[0].mxu0 %v513
        %v684 = vpop.f32.mrb[0].mxu0
        %v685 = vadd.f32 0.0, %v684
        %v686 = vpop.f32.mrb[0].mxu0
        %687 = vmatprep.mubr.f32.mxu0 %v516
        %688 = vmatmul.mubr.f32.gmra.mrb[0].mxu0 %v515
        %v689 = vpop.f32.mrb[0].mxu0
        %v690 = vadd.f32 0.0, %v689
        %v691 = vpop.f32.mrb[0].mxu0
        %692 = vmatprep.mubr.f32.mxu0 %v518
        %693 = vmatmul.mubr.f32.gmra.mrb[0].mxu0 %v517
        %v694 = vpop.f32.mrb[0].mxu0
        %v695 = vadd.f32 0.0, %v694
        %v696 = vpop.f32.mrb[0].mxu0
        %697 = vmatprep.mubr.f32.mxu0 %v520
        %698 = vmatmul.mubr.f32.gmra.mrb[0].mxu0 %v519
        %v699 = vpop.f32.mrb[0].mxu0
        %v700 = vadd.f32 0.0, %v699
        %v701 = vpop.f32.mrb[0].mxu0
        %702 = vmatprep.mubr.f32.mxu0 %v522
        %703 = vmatmul.mubr.f32.gmra.mrb[0].mxu0 %v521
        %v704 = vpop.f32.mrb[0].mxu0
        %v705 = vadd.f32 0.0, %v704
        %v706 = vpop.f32.mrb[0].mxu0
        %707 = vmatprep.mubr.f32.mxu0 %v524
        %708 = vmatmul.mubr.f32.gmra.mrb[0].mxu0 %v523
        %v709 = vpop.f32.mrb[0].mxu0
        %v710 = vadd.f32 0.0, %v709
        %v711 = vpop.f32.mrb[0].mxu0
        %712 = vmatprep.mubr.f32.mxu0 %v526
        %713 = vmatmul.mubr.f32.gmra.mrb[0].mxu0 %v525
        %v714 = vpop.f32.mrb[0].mxu0
        %v715 = vadd.f32 0.0, %v714
        %v716 = vpop.f32.mrb[0].mxu0
        %717 = vmatprep.mubr.f32.mxu0 %v528
        %718 = vmatmul.mubr.f32.gmra.mrb[0].mxu0 %v527
        %v719 = vpop.f32.mrb[0].mxu0
        %v720 = vadd.f32 0.0, %v719
        %v721 = vpop.f32.mrb[0].mxu0
        %722 = vmatprep.mubr.f32.mxu0 %v530
        %723 = vmatmul.mubr.f32.gmra.mrb[0].mxu0 %v529
        %v724 = vpop.f32.mrb[0].mxu0
        %v725 = vadd.f32 0.0, %v724
        %v726 = vpop.f32.mrb[0].mxu0
        %727 = vmatprep.mubr.f32.mxu0 %v532
        %728 = vmatmul.mubr.f32.gmra.mrb[0].mxu0 %v531
        %v729 = vpop.f32.mrb[0].mxu0
        %v730 = vadd.f32 0.0, %v729
        %v731 = vpop.f32.mrb[0].mxu0
        %732 = vmatprep.mubr.f32.mxu0 %v534
        %733 = vmatmul.mubr.f32.gmra.mrb[0].mxu0 %v533
        %v734 = vpop.f32.mrb[0].mxu0
        %v735 = vadd.f32 0.0, %v734
        %v736 = vpop.f32.mrb[0].mxu0
        %737 = vmatprep.mubr.f32.mxu0 %v536
        %738 = vmatmul.mubr.f32.gmra.mrb[0].mxu0 %v535
        %v739 = vpop.f32.mrb[0].mxu0
        %v740 = vadd.f32 0.0, %v739
        %v741 = vpop.f32.mrb[0].mxu0
        %742 = vmatprep.mubr.f32.mxu0 %v538
        %743 = vmatmul.mubr.f32.gmra.mrb[0].mxu0 %v537
        %v744 = vpop.f32.mrb[0].mxu0
        %v745 = vadd.f32 0.0, %v744
        %v746 = vpop.f32.mrb[0].mxu0
        %747 = vdwg.mxu0
        %748 = vst [vmem:[%s282] sm:$0xff] %v670
        %749 = vst [vmem:[%s282 + $0x8] sm:$0xff] %v675
        %750 = vst [vmem:[%s282 + $0x10] sm:$0xff] %v680
        %751 = vst [vmem:[%s282 + $0x18] sm:$0xff] %v685
        %752 = vst [vmem:[%s282 + $0x20] sm:$0xff] %v690
        %753 = vst [vmem:[%s282 + $0x28] sm:$0xff] %v695
        %754 = vst [vmem:[%s282 + $0x30] sm:$0xff] %v700
        %755 = vst [vmem:[%s282 + $0x38] sm:$0xff] %v705
        %756 = vst [vmem:[%s282 + $0x40] sm:$0xff] %v710
        %757 = vst [vmem:[%s282 + $0x48] sm:$0xff] %v715
        %758 = vst [vmem:[%s282 + $0x50] sm:$0xff] %v720
        %759 = vst [vmem:[%s282 + $0x58] sm:$0xff] %v725
        %760 = vst [vmem:[%s282 + $0x60] sm:$0xff] %v730
        %761 = vst [vmem:[%s282 + $0x68] sm:$0xff] %v735
        %762 = vst [vmem:[%s282 + $0x70] sm:$0xff] %v740
        %763 = vst [vmem:[%s282 + $0x78] sm:$0xff] %v745
        %s764 = sand.u32 %s124, 1
        %s765 = scalar_lea.sflag [#allocation4], %s764
        %s766 = sand.u32 %s124, 1
        %s767 = smul.addr %s766, 256
        %s768 = scalar_lea.vmem [#allocation8], %s767
        %s769 = sand.u32 %s150, 1
        %s770 = scalar_lea.sflag [#allocation10], %s769
        %s771 = sand.u32 %s150, 1
        %s772 = smul.addr %s771, 128
        %s773 = scalar_lea.vmem [#allocation9], %s772
        // Predicated region
        $region49: #{tpu_custom_call.1} parent=35 // pred_check
          %p774 = pneg %p134
        $region50: #{tpu_custom_call.1} parent=35 // pred_check_branch
          %776 = sbr.rel (%p774) target = $region52
        $region51: #{tpu_custom_call.1} parent=35 // pred_region
          %s777 = smul.u32 16, %s27
          %s779 = ssub.s32 4096, 4096
          %780 = vsyncadd %s765, %s779
          %s781 = smul.addr %s777, 2
          %s782 = smul.addr %s781, 128
          %s783 = scalar_lea.hbm %s4, %s782
          %s784 = sshll.u32 %s768, 4
          %s785 = int_to_ptr.vmem [resolvable:$true] %s784
          %790 = dma.vmem_to_hbm [thread:$0]  %s785, 4096, %s783, %s765, 256, 256, 16
        $region52: #{tpu_custom_call.1} parent=35 // pred_fallthru
          _
        // Predicated region
        $region53: #{tpu_custom_call.1} parent=35 // pred_check
          %p791 = pneg %p160
        $region54: #{tpu_custom_call.1} parent=35 // pred_check_branch
          %793 = sbr.rel (%p791) target = $region56
        $region55: #{tpu_custom_call.1} parent=35 // pred_region
          %s794 = smul.u32 16, %s27
          %s796 = ssub.s32 2048, 2048
          %797 = vsyncadd %s770, %s796
          %s798 = smul.addr %s794, 128
          %s799 = scalar_lea.hbm %s5, %s798
          %s800 = sshll.u32 %s773, 4
          %s801 = int_to_ptr.vmem [resolvable:$true] %s800
          %806 = dma.vmem_to_hbm [thread:$0]  %s801, 2048, %s799, %s770, 128, 128, 8
        $region56: #{tpu_custom_call.1} parent=35 // pred_fallthru
          _
      $region36: #{tpu_custom_call.1} parent=5 // pred_fallthru
        _
      %p807 = scmp.le.s32.totalorder 2, %s22
      // Predicated region
      $region57: #{tpu_custom_call.1} parent=5 // pred_check
        %p808 = pneg %p807
      $region58: #{tpu_custom_call.1} parent=5 // pred_check_branch
        %810 = sbr.rel (%p808) target = $region60
      $region59: #{tpu_custom_call.1} parent=5 // pred_region
        %s811 = ssub.s32 %s22, 2
        // Predicated region
        $region61: #{tpu_custom_call.1} parent=59 // pred_check
          %p812 = pneg %p140
        $region62: #{tpu_custom_call.1} parent=59 // pred_check_branch
          %814 = sbr.rel (%p812) target = $region64
        $region63: #{tpu_custom_call.1} parent=59 // pred_region
          %s815 = sand.u32 %s125, 1
          %s816 = scalar_lea.sflag [#allocation4], %s815
          %s817 = sand.u32 %s125, 1
          %s818 = smul.addr %s817, 256
          %s819 = scalar_lea.vmem [#allocation8], %s818
          %820 = dma.done %s816, 4096
        $region64: #{tpu_custom_call.1} parent=59 // pred_fallthru
          _
        // Predicated region
        $region65: #{tpu_custom_call.1} parent=59 // pred_check
          %p821 = pneg %p166
        $region66: #{tpu_custom_call.1} parent=59 // pred_check_branch
          %823 = sbr.rel (%p821) target = $region68
        $region67: #{tpu_custom_call.1} parent=59 // pred_region
          %s824 = sand.u32 %s151, 1
          %s825 = scalar_lea.sflag [#allocation10], %s824
          %s826 = sand.u32 %s151, 1
          %s827 = smul.addr %s826, 128
          %s828 = scalar_lea.vmem [#allocation9], %s827
          %829 = dma.done %s825, 2048
        $region68: #{tpu_custom_call.1} parent=59 // pred_fallthru
          _
      $region60: #{tpu_custom_call.1} parent=5 // pred_fallthru
        _
    $region6: #{tpu_custom_call.1} parent=1 // loop_footer
      %s26 = sadd.s32 1, %s22
    $region7: #{tpu_custom_call.1} parent=1 // loop_footer_branch
      %21 = sbr.rel target = $region3
    $region8: #{tpu_custom_call.1} parent=1 // loop_exit
      _
    %830 = vsyncpa [#allocation3], 1
    %s831 = scalar_lea.sflag [#allocation3], 1
    %832 = vsyncpa %s831, 1
    %833 = vsyncpa [#allocation6], 1
    %834 = vsyncpa [#allocation4], 1
    %s835 = scalar_lea.sflag [#allocation4], 1
    %836 = vsyncpa %s835, 1
    %837 = vsyncpa [#allocation10], 1
    %s838 = scalar_lea.sflag [#allocation10], 1
    %839 = vsyncpa %s838, 1

</llo_original>
